<compile_context>
chip_gen: v5e
topology: v5e:2x2
jax: 0.10.0
libtpu: 0.0.40
codegen_flags: <defaults>
</compile_context>

<pallas_src>
import functools
import math

import jax
import jax.numpy as jnp
import numpy as np
from jax.experimental import pallas as pl
from jax.experimental.pallas import tpu as pltpu

LN_EPS = 1e-12


def _gelu_exact(x):
    # pytorch_pretrained_bert gelu: x * 0.5 * (1 + erf(x / sqrt(2)))
    return x * 0.5 * (1.0 + jax.lax.erf(x / math.sqrt(2.0)))


def _round_up(x, m):
    return (x + m - 1) // m * m


def _vmem_limit_bytes():
    # Conservative fallback = v7x physical VMEM per TensorCore (64 MiB).
    cap = 64 * 1024 * 1024
    try:
        cap = pltpu.get_tpu_info().vmem_capacity_bytes
    except Exception:
        pass
    return int(max(32 * 1024 * 1024, min(cap * 3 // 4, 96 * 1024 * 1024)))


# ---------------------------------------------------------------------------
# Kernel 1: LM prediction head (transform dense + gelu + layernorm + decoder).
# Grid = (row_tiles, vocab_tiles); the transform result for a row tile is
# computed once at vocab-tile 0 and cached (bf16) in VMEM scratch, then reused
# for every vocab tile (only the big decoder matmul runs per vocab tile).
# ---------------------------------------------------------------------------
def lm_head_kernel(x_ref, wt_ref, bt_ref, gamma_ref, beta_ref,
                   dec_ref, dbias_ref, out_ref, h_scratch):
    @pl.when(pl.program_id(1) == 0)
    def _():
        x = x_ref[...].astype(jnp.float32)
        h = jnp.dot(x, wt_ref[...], preferred_element_type=jnp.float32) + bt_ref[...]
        h = _gelu_exact(h)
        mean = jnp.mean(h, axis=-1, keepdims=True)
        var = jnp.mean((h - mean) ** 2, axis=-1, keepdims=True)
        h = (h - mean) * jax.lax.rsqrt(var + LN_EPS)
        h = h * gamma_ref[...] + beta_ref[...]
        h_scratch[...] = h.astype(h_scratch.dtype)

    out_ref[...] = (
        jnp.dot(h_scratch[...], dec_ref[...], preferred_element_type=jnp.float32)
        + dbias_ref[...]
    ).astype(out_ref.dtype)


def lm_prediction_head(seq_flat, wt, bt, gamma, beta, dec_w, dec_b,
                       *, tile_m, tile_n, compute_dtype, logits_dtype):
    R, H = seq_flat.shape
    V = dec_w.shape[1]

    # Clamp tiles to the (padded) problem size and keep (8, 128) legality.
    tm = _round_up(min(tile_m, _round_up(R, 8)), 8)
    tn = _round_up(min(tile_n, _round_up(V, 128)), 128)
    Rp = _round_up(R, tm)
    Vp = _round_up(V, tn)

    # Handle non-multiple rows / vocab (e.g. V=30522) by zero-padding; padded
    # rows stay finite through LayerNorm (0 * rsqrt(eps) = 0) and are sliced off.
    if Rp != R:
        seq_flat = jnp.pad(seq_flat, ((0, Rp - R), (0, 0)))
    dec_w = dec_w.astype(compute_dtype)  # bf16 decoder stream; f32 accumulate.
    if Vp != V:
        dec_w = jnp.pad(dec_w, ((0, 0), (0, Vp - V)))
        dec_b = jnp.pad(dec_b, ((0, 0), (0, Vp - V)))

    grid = (Rp // tm, Vp // tn)

    out = pl.pallas_call(
        lm_head_kernel,
        out_shape=jax.ShapeDtypeStruct((Rp, Vp), logits_dtype),
        grid_spec=pltpu.PrefetchScalarGridSpec(
            num_scalar_prefetch=0,
            grid=grid,
            in_specs=[
                pl.BlockSpec((tm, H), lambda i, j: (i, 0)),
                pl.BlockSpec((H, H), lambda i, j: (0, 0)),
                pl.BlockSpec((1, H), lambda i, j: (0, 0)),
                pl.BlockSpec((1, H), lambda i, j: (0, 0)),
                pl.BlockSpec((1, H), lambda i, j: (0, 0)),
                pl.BlockSpec((H, tn), lambda i, j: (0, j)),
                pl.BlockSpec((1, tn), lambda i, j: (0, j)),
            ],
            out_specs=pl.BlockSpec((tm, tn), lambda i, j: (i, j)),
            scratch_shapes=[pltpu.VMEM((tm, H), compute_dtype)],
        ),
        compiler_params=pltpu.CompilerParams(
            # Row tiles are independent (megacore-shardable on v7x); the vocab
            # axis must stay sequential for the h_scratch caching.
            dimension_semantics=("parallel", "arbitrary"),
            vmem_limit_bytes=_vmem_limit_bytes(),
        ),
    )(seq_flat, wt, bt, gamma, beta, dec_w, dec_b)

    if Rp != R or Vp != V:
        out = out[:R, :V]
    return out


# ---------------------------------------------------------------------------
# Kernel 2: pooled-output heads, fused into a single (H, 4) matmul
# (seq_relationship cols 0:2, domain_relationship cols 2:4).
# GradientReverse is the identity in the forward pass.
# TODO(synk): gradient reversal (backward negation) has no forward-pass effect;
#             a custom_vjp would be needed if gradients were required.
# ---------------------------------------------------------------------------
def pooled_heads_kernel(p_ref, w_ref, b_ref, out_ref):
    p = p_ref[...].astype(jnp.float32)
    out_ref[...] = (
        jnp.dot(p, w_ref[...], preferred_element_type=jnp.float32) + b_ref[...]
    )


def pooled_heads(pooled, wseq, bseq, wdom, bdom):
    B, H = pooled.shape
    w = jnp.concatenate([wseq, wdom], axis=1)   # (H, 4)
    b = jnp.concatenate([bseq, bdom], axis=1)   # (1, 4)
    out = pl.pallas_call(
        pooled_heads_kernel,
        out_shape=jax.ShapeDtypeStruct((B, 4), jnp.float32),
        grid_spec=pltpu.PrefetchScalarGridSpec(
            num_scalar_prefetch=0,
            grid=(1,),
            in_specs=[
                pl.BlockSpec((B, H), lambda i: (0, 0)),
                pl.BlockSpec((H, 4), lambda i: (0, 0)),
                pl.BlockSpec((1, 4), lambda i: (0, 0)),
            ],
            out_specs=pl.BlockSpec((B, 4), lambda i: (0, 0)),
        ),
    )(pooled, w, b)
    return out[:, :2], out[:, 2:]


# ---------------------------------------------------------------------------
# Full module forward
# ---------------------------------------------------------------------------
@functools.partial(
    jax.jit, static_argnames=("tile_m", "tile_n", "compute_dtype", "logits_dtype"))
def bert_domain_adaptation_heads(sequence_output, pooled_output, params,
                                 tile_m=256, tile_n=1024,
                                 compute_dtype=jnp.bfloat16,
                                 logits_dtype=jnp.float32):
    B, S, H = sequence_output.shape
    # No wrapper-side astype: keep native dtype, cast inside the kernel.
    seq_flat = sequence_output.reshape(B * S, H)
    scores_flat = lm_prediction_head(
        seq_flat,
        params["transform_w"], params["transform_b"],
        params["ln_gamma"], params["ln_beta"],
        params["decoder_w"], params["decoder_b"],
        tile_m=tile_m, tile_n=tile_n,
        compute_dtype=compute_dtype, logits_dtype=logits_dtype,
    )
    V = params["decoder_w"].shape[1]
    prediction_scores = scores_flat.reshape(B, S, V)
    seq_rel, dom_rel = pooled_heads(
        pooled_output,
        params["seq_w"], params["seq_b"],
        params["dom_w"], params["dom_b"],
    )
    return prediction_scores, seq_rel, dom_rel


def reference_forward(sequence_output, pooled_output, params):
    h = sequence_output @ params["transform_w"] + params["transform_b"]
    h = _gelu_exact(h)
    mean = jnp.mean(h, axis=-1, keepdims=True)
    var = jnp.mean((h - mean) ** 2, axis=-1, keepdims=True)
    h = (h - mean) / jnp.sqrt(var + LN_EPS)
    h = h * params["ln_gamma"] + params["ln_beta"]
    pred = h @ params["decoder_w"] + params["decoder_b"]
    seq_rel = pooled_output @ params["seq_w"] + params["seq_b"]
    dom_rel = pooled_output @ params["dom_w"] + params["dom_b"]
    return pred, seq_rel, dom_rel


if __name__ == "__main__":
    # Small config: batch=2, seq=9, hidden=32, vocab=250.
    # S and V intentionally NOT multiples of the tiles, to exercise the
    # remainder (padding) path that real vocab sizes like 30522 hit.
    B, S, H, V = 2, 9, 32, 250

    key = jax.random.PRNGKey(0)
    keys = jax.random.split(key, 8)

    # bert_model_embedding_weights: (V, H) as in PyTorch; decoder weight is its
    # transpose so the kernel computes x @ (H, V).
    emb = jax.random.normal(keys[0], (V, H), jnp.float32) * 0.02
    params = {
        "transform_w": jax.random.normal(keys[1], (H, H), jnp.float32) * 0.02,
        "transform_b": jnp.zeros((1, H), jnp.float32),
        "ln_gamma": jnp.ones((1, H), jnp.float32),
        "ln_beta": jnp.zeros((1, H), jnp.float32),
        "decoder_w": emb.T,                               # (H, V)
        "decoder_b": jnp.zeros((1, V), jnp.float32),      # LM head bias (zeros)
        "seq_w": jax.random.normal(keys[2], (H, 2), jnp.float32) * 0.02,
        "seq_b": jnp.zeros((1, 2), jnp.float32),
        "dom_w": jax.random.normal(keys[3], (H, 2), jnp.float32) * 0.02,
        "dom_b": jnp.zeros((1, 2), jnp.float32),
    }

    sequence_output = jax.random.normal(keys[4], (B, S, H), jnp.float32)
    pooled_output = jax.random.normal(keys[5], (B, H), jnp.float32)

    pred, seq_rel, dom_rel = bert_domain_adaptation_heads(
        sequence_output, pooled_output, params)
    jax.block_until_ready((pred, seq_rel, dom_rel))

    # Cross-check against plain-JAX (f32) reference. The decoder path runs in
    # bf16 with f32 accumulation, so tolerances are bf16-level for the logits.
    pred_r, seq_r, dom_r = reference_forward(sequence_output, pooled_output, params)
    np.testing.assert_allclose(np.asarray(pred), np.asarray(pred_r), atol=2e-2, rtol=2e-2)
    np.testing.assert_allclose(np.asarray(seq_rel), np.asarray(seq_r), atol=1e-4, rtol=1e-4)
    np.testing.assert_allclose(np.asarray(dom_rel), np.asarray(dom_r), atol=1e-4, rtol=1e-4)

    assert pred.shape == (B, S, V) and seq_rel.shape == (B, 2) and dom_rel.shape == (B, 2)
    print("KERNEL_OK")
</pallas_src>

<mosaic_0001>
module attributes {stable_mosaic.version = 11 : i64} {
  func.func @lm_head_kernel(%arg0: i32, %arg1: i32, %arg2: memref<24x32xf32, #tpu.memory_space<vmem>>, %arg3: memref<32x32xf32, #tpu.memory_space<vmem>>, %arg4: memref<1x32xf32, #tpu.memory_space<vmem>>, %arg5: memref<1x32xf32, #tpu.memory_space<vmem>>, %arg6: memref<1x32xf32, #tpu.memory_space<vmem>>, %arg7: memref<32x256xbf16, #tpu.memory_space<vmem>>, %arg8: memref<1x256xf32, #tpu.memory_space<vmem>>, %arg9: memref<24x256xf32, #tpu.memory_space<vmem>>, %arg10: memref<24x32xbf16, #tpu.memory_space<vmem>>) attributes {dimension_semantics = [#tpu.dimension_semantics<parallel>, #tpu.dimension_semantics<arbitrary>], iteration_bounds = array<i64: 1, 1>, scalar_prefetch = 0 : i64, scratch_operands = 1 : i64, tpu.core_type = #tpu.core_type<tc>, window_params = [{transform_indices = @transform_0, window_bounds = array<i64: 24, 32>}, {pipeline_mode = #tpu.pipeline_mode<synchronous>, transform_indices = @transform_1, window_bounds = array<i64: 32, 32>}, {pipeline_mode = #tpu.pipeline_mode<synchronous>, transform_indices = @transform_2, window_bounds = array<i64: 1, 32>}, {pipeline_mode = #tpu.pipeline_mode<synchronous>, transform_indices = @transform_3, window_bounds = array<i64: 1, 32>}, {pipeline_mode = #tpu.pipeline_mode<synchronous>, transform_indices = @transform_4, window_bounds = array<i64: 1, 32>}, {transform_indices = @transform_5, window_bounds = array<i64: 32, 256>}, {transform_indices = @transform_6, window_bounds = array<i64: 1, 256>}, {transform_indices = @transform_7, window_bounds = array<i64: 24, 256>}]} {
    %c0_i32 = arith.constant 0 : i32
    %0 = arith.cmpi eq, %arg1, %c0_i32 : i32
    %1 = arith.extui %0 : i1 to i32
    %c0_i32_0 = arith.constant 0 : i32
    %2 = arith.cmpi ne, %1, %c0_i32_0 : i32
    scf.if %2 {
      %c0_8 = arith.constant 0 : index
      %c0_9 = arith.constant 0 : index
      %10 = vector.load %arg2[%c0_8, %c0_9] : memref<24x32xf32, #tpu.memory_space<vmem>>, vector<24x32xf32>
      %c0_10 = arith.constant 0 : index
      %c0_11 = arith.constant 0 : index
      %11 = vector.load %arg3[%c0_10, %c0_11] : memref<32x32xf32, #tpu.memory_space<vmem>>, vector<32x32xf32>
      %cst_12 = arith.constant dense<0.000000e+00> : vector<24x32xf32>
      %12 = tpu.matmul %10, %11, %cst_12 {dimension_numbers = #tpu.dot_dimension_numbers<[1], [0], [0], [1], [0, 0, 1, 1], [], []>} : vector<24x32xf32>, vector<32x32xf32>, vector<24x32xf32> -> vector<24x32xf32>
      %c0_13 = arith.constant 0 : index
      %c0_14 = arith.constant 0 : index
      %13 = vector.load %arg4[%c0_13, %c0_14] : memref<1x32xf32, #tpu.memory_space<vmem>>, vector<1x32xf32>
      %14 = vector.broadcast %13 : vector<1x32xf32> to vector<24x32xf32>
      %15 = arith.addf %12, %14 : vector<24x32xf32>
      %cst_15 = arith.constant 5.000000e-01 : f32
      %16 = vector.broadcast %cst_15 : f32 to vector<24x32xf32>
      %17 = arith.mulf %15, %16 : vector<24x32xf32>
      %cst_16 = arith.constant 1.41421354 : f32
      %18 = vector.broadcast %cst_16 : f32 to vector<24x32xf32>
      %19 = arith.divf %15, %18 : vector<24x32xf32>
      %20 = math.erf %19 : vector<24x32xf32>
      %cst_17 = arith.constant 1.000000e+00 : f32
      %21 = vector.broadcast %cst_17 : f32 to vector<24x32xf32>
      %22 = arith.addf %21, %20 : vector<24x32xf32>
      %23 = arith.mulf %17, %22 : vector<24x32xf32>
      %cst_18 = arith.constant dense<0.000000e+00> : vector<24xf32>
      %24 = vector.multi_reduction <add>, %23, %cst_18 [1] : vector<24x32xf32> to vector<24xf32>
      %25 = vector.shape_cast %24 : vector<24xf32> to vector<24x1xf32>
      %cst_19 = arith.constant 3.200000e+01 : f32
      %26 = vector.broadcast %cst_19 : f32 to vector<24x1xf32>
      %27 = arith.divf %25, %26 : vector<24x1xf32>
      %28 = vector.broadcast %27 : vector<24x1xf32> to vector<24x32xf32>
      %29 = arith.subf %23, %28 : vector<24x32xf32>
      %30 = arith.mulf %29, %29 : vector<24x32xf32>
      %cst_20 = arith.constant dense<0.000000e+00> : vector<24xf32>
      %31 = vector.multi_reduction <add>, %30, %cst_20 [1] : vector<24x32xf32> to vector<24xf32>
      %32 = vector.shape_cast %31 : vector<24xf32> to vector<24x1xf32>
      %cst_21 = arith.constant 3.200000e+01 : f32
      %33 = vector.broadcast %cst_21 : f32 to vector<24x1xf32>
      %34 = arith.divf %32, %33 : vector<24x1xf32>
      %35 = vector.broadcast %27 : vector<24x1xf32> to vector<24x32xf32>
      %36 = arith.subf %23, %35 : vector<24x32xf32>
      %cst_22 = arith.constant 9.99999996E-13 : f32
      %37 = vector.broadcast %cst_22 : f32 to vector<24x1xf32>
      %38 = arith.addf %34, %37 : vector<24x1xf32>
      %39 = math.rsqrt %38 : vector<24x1xf32>
      %40 = vector.broadcast %39 : vector<24x1xf32> to vector<24x32xf32>
      %41 = arith.mulf %36, %40 : vector<24x32xf32>
      %c0_23 = arith.constant 0 : index
      %c0_24 = arith.constant 0 : index
      %42 = vector.load %arg5[%c0_23, %c0_24] : memref<1x32xf32, #tpu.memory_space<vmem>>, vector<1x32xf32>
      %43 = vector.broadcast %42 : vector<1x32xf32> to vector<24x32xf32>
      %44 = arith.mulf %41, %43 : vector<24x32xf32>
      %c0_25 = arith.constant 0 : index
      %c0_26 = arith.constant 0 : index
      %45 = vector.load %arg6[%c0_25, %c0_26] : memref<1x32xf32, #tpu.memory_space<vmem>>, vector<1x32xf32>
      %46 = vector.broadcast %45 : vector<1x32xf32> to vector<24x32xf32>
      %47 = arith.addf %44, %46 : vector<24x32xf32>
      %48 = arith.truncf %47 : vector<24x32xf32> to vector<24x32xbf16>
      %c0_27 = arith.constant 0 : index
      %c0_28 = arith.constant 0 : index
      %49 = vector.load %arg10[%c0_27, %c0_28] : memref<24x32xbf16, #tpu.memory_space<vmem>>, vector<24x32xbf16>
      tpu.vector_store %arg10[%c0_27, %c0_28], %48 {strides = array<i32>} : memref<24x32xbf16, #tpu.memory_space<vmem>>, vector<24x32xbf16>,
    } else {
    }
    %c0 = arith.constant 0 : index
    %c0_1 = arith.constant 0 : index
    %3 = vector.load %arg10[%c0, %c0_1] : memref<24x32xbf16, #tpu.memory_space<vmem>>, vector<24x32xbf16>
    %c0_2 = arith.constant 0 : index
    %c0_3 = arith.constant 0 : index
    %4 = vector.load %arg7[%c0_2, %c0_3] : memref<32x256xbf16, #tpu.memory_space<vmem>>, vector<32x256xbf16>
    %cst = arith.constant dense<0.000000e+00> : vector<24x256xf32>
    %5 = tpu.matmul %3, %4, %cst {dimension_numbers = #tpu.dot_dimension_numbers<[1], [0], [0], [1], [0, 0, 1, 1], [], []>} : vector<24x32xbf16>, vector<32x256xbf16>, vector<24x256xf32> -> vector<24x256xf32>
    %c0_4 = arith.constant 0 : index
    %c0_5 = arith.constant 0 : index
    %6 = vector.load %arg8[%c0_4, %c0_5] : memref<1x256xf32, #tpu.memory_space<vmem>>, vector<1x256xf32>
    %7 = vector.broadcast %6 : vector<1x256xf32> to vector<24x256xf32>
    %8 = arith.addf %5, %7 : vector<24x256xf32>
    %c0_6 = arith.constant 0 : index
    %c0_7 = arith.constant 0 : index
    %9 = vector.load %arg9[%c0_6, %c0_7] : memref<24x256xf32, #tpu.memory_space<vmem>>, vector<24x256xf32>
    tpu.vector_store %arg9[%c0_6, %c0_7], %8 {strides = array<i32>} : memref<24x256xf32, #tpu.memory_space<vmem>>, vector<24x256xf32>,
    return
  }
  func.func @transform_0(%arg0: i32, %arg1: i32) -> (i32, i32) {
    %c0_i32 = arith.constant 0 : i32
    %c0_i32_0 = arith.constant 0 : i32
    return %arg0, %c0_i32 : i32, i32
  }
  func.func @transform_1(%arg0: i32, %arg1: i32) -> (i32, i32) {
    %c0_i32 = arith.constant 0 : i32
    %c0_i32_0 = arith.constant 0 : i32
    %c0_i32_1 = arith.constant 0 : i32
    return %c0_i32, %c0_i32_0 : i32, i32
  }
  func.func @transform_2(%arg0: i32, %arg1: i32) -> (i32, i32) {
    %c0_i32 = arith.constant 0 : i32
    %c0_i32_0 = arith.constant 0 : i32
    %c0_i32_1 = arith.constant 0 : i32
    return %c0_i32, %c0_i32_0 : i32, i32
  }
  func.func @transform_3(%arg0: i32, %arg1: i32) -> (i32, i32) {
    %c0_i32 = arith.constant 0 : i32
    %c0_i32_0 = arith.constant 0 : i32
    %c0_i32_1 = arith.constant 0 : i32
    return %c0_i32, %c0_i32_0 : i32, i32
  }
  func.func @transform_4(%arg0: i32, %arg1: i32) -> (i32, i32) {
    %c0_i32 = arith.constant 0 : i32
    %c0_i32_0 = arith.constant 0 : i32
    %c0_i32_1 = arith.constant 0 : i32
    return %c0_i32, %c0_i32_0 : i32, i32
  }
  func.func @transform_5(%arg0: i32, %arg1: i32) -> (i32, i32) {
    %c0_i32 = arith.constant 0 : i32
    %c0_i32_0 = arith.constant 0 : i32
    return %c0_i32, %arg1 : i32, i32
  }
  func.func @transform_6(%arg0: i32, %arg1: i32) -> (i32, i32) {
    %c0_i32 = arith.constant 0 : i32
    %c0_i32_0 = arith.constant 0 : i32
    return %c0_i32, %arg1 : i32, i32
  }
  func.func @transform_7(%arg0: i32, %arg1: i32) -> (i32, i32) {
    %c0_i32 = arith.constant 0 : i32
    return %arg0, %arg1 : i32, i32
  }
}

module attributes {stable_mosaic.version = 11 : i64} {
  func.func @pooled_heads_kernel(%arg0: i32, %arg1: memref<2x32xf32, #tpu.memory_space<vmem>>, %arg2: memref<32x4xf32, #tpu.memory_space<vmem>>, %arg3: memref<1x4xf32, #tpu.memory_space<vmem>>, %arg4: memref<2x4xf32, #tpu.memory_space<vmem>>) attributes {dimension_semantics = [#tpu.dimension_semantics<arbitrary>], iteration_bounds = array<i64: 1>, scalar_prefetch = 0 : i64, scratch_operands = 0 : i64, tpu.core_type = #tpu.core_type<tc>, window_params = [{pipeline_mode = #tpu.pipeline_mode<synchronous>, transform_indices = @transform_0, window_bounds = array<i64: 2, 32>}, {pipeline_mode = #tpu.pipeline_mode<synchronous>, transform_indices = @transform_1, window_bounds = array<i64: 32, 4>}, {pipeline_mode = #tpu.pipeline_mode<synchronous>, transform_indices = @transform_2, window_bounds = array<i64: 1, 4>}, {pipeline_mode = #tpu.pipeline_mode<synchronous>, transform_indices = @transform_3, window_bounds = array<i64: 2, 4>}]} {
    %c0 = arith.constant 0 : index
    %c0_0 = arith.constant 0 : index
    %0 = vector.load %arg1[%c0, %c0_0] : memref<2x32xf32, #tpu.memory_space<vmem>>, vector<2x32xf32>
    %c0_1 = arith.constant 0 : index
    %c0_2 = arith.constant 0 : index
    %1 = vector.load %arg2[%c0_1, %c0_2] : memref<32x4xf32, #tpu.memory_space<vmem>>, vector<32x4xf32>
    %cst = arith.constant dense<0.000000e+00> : vector<2x4xf32>
    %2 = tpu.matmul %0, %1, %cst {dimension_numbers = #tpu.dot_dimension_numbers<[1], [0], [0], [1], [0, 0, 1, 1], [], []>} : vector<2x32xf32>, vector<32x4xf32>, vector<2x4xf32> -> vector<2x4xf32>
    %c0_3 = arith.constant 0 : index
    %c0_4 = arith.constant 0 : index
    %3 = vector.load %arg3[%c0_3, %c0_4] : memref<1x4xf32, #tpu.memory_space<vmem>>, vector<1x4xf32>
    %4 = vector.broadcast %3 : vector<1x4xf32> to vector<2x4xf32>
    %5 = arith.addf %2, %4 : vector<2x4xf32>
    %c0_5 = arith.constant 0 : index
    %c0_6 = arith.constant 0 : index
    %6 = vector.load %arg4[%c0_5, %c0_6] : memref<2x4xf32, #tpu.memory_space<vmem>>, vector<2x4xf32>
    tpu.vector_store %arg4[%c0_5, %c0_6], %5 {strides = array<i32>} : memref<2x4xf32, #tpu.memory_space<vmem>>, vector<2x4xf32>,
    return
  }
  func.func @transform_0(%arg0: i32) -> (i32, i32) {
    %c0_i32 = arith.constant 0 : i32
    %c0_i32_0 = arith.constant 0 : i32
    %c0_i32_1 = arith.constant 0 : i32
    return %c0_i32, %c0_i32_0 : i32, i32
  }
  func.func @transform_1(%arg0: i32) -> (i32, i32) {
    %c0_i32 = arith.constant 0 : i32
    %c0_i32_0 = arith.constant 0 : i32
    %c0_i32_1 = arith.constant 0 : i32
    return %c0_i32, %c0_i32_0 : i32, i32
  }
  func.func @transform_2(%arg0: i32) -> (i32, i32) {
    %c0_i32 = arith.constant 0 : i32
    %c0_i32_0 = arith.constant 0 : i32
    %c0_i32_1 = arith.constant 0 : i32
    return %c0_i32, %c0_i32_0 : i32, i32
  }
  func.func @transform_3(%arg0: i32) -> (i32, i32) {
    %c0_i32 = arith.constant 0 : i32
    %c0_i32_0 = arith.constant 0 : i32
    %c0_i32_1 = arith.constant 0 : i32
    return %c0_i32, %c0_i32_0 : i32, i32
  }
}

</mosaic_0001>

<llo_original>
// kernel: bert_domain_adaptation_heads.3
$region0: #{bert_domain_adaptation_heads.3}
  #allocation0 [shape = 'u32[]', space=smem, size = 0x4, offset = 0x4, fixed_abs, tag = 'smem constant byte address 0x4 - core index']
  #allocation1 [shape = 'u32[72,128]{1,0:T(1,128)}', space=vmem, size = 0x9000, scoped, tag = 'internal scratch']
  %s0 = inlined_call_operand.vmem [shape: f32[2,32], index: 0, kind: input, shape index: {}]
  %s1 = inlined_call_operand.vmem [shape: f32[32,4], index: 1, kind: input, shape index: {}]
  %s2 = inlined_call_operand.vmem [shape: f32[1,4], index: 2, kind: input, shape index: {}]
  %s3 = inlined_call_operand.vmem [shape: f32[2,4], index: 3, kind: output, shape index: {}]
  %s4 = sld [smem:[#allocation0]]
  $region22: #{bert_domain_adaptation_heads.3} parent=0
    _
  %s6 = ssub.s32 1, %s4
  %s7 = scalar_select 0, %s6, %s4
  // Predicated region
  $region2: #{bert_domain_adaptation_heads.3} parent=0 // pred_check
    _
  $region3: #{bert_domain_adaptation_heads.3} parent=0 // pred_check_branch
    %9 = sbr.rel (0) target = $region5
  $region4: #{bert_domain_adaptation_heads.3} parent=0 // pred_region
    _
  $region5: #{bert_domain_adaptation_heads.3} parent=0 // pred_fallthru
    _
  // Predicated region
  $region6: #{bert_domain_adaptation_heads.3} parent=0 // pred_check
    _
  $region7: #{bert_domain_adaptation_heads.3} parent=0 // pred_check_branch
    %11 = sbr.rel (0) target = $region9
  $region8: #{bert_domain_adaptation_heads.3} parent=0 // pred_region
    _
  $region9: #{bert_domain_adaptation_heads.3} parent=0 // pred_fallthru
    _
  // Predicated region
  $region10: #{bert_domain_adaptation_heads.3} parent=0 // pred_check
    _
  $region11: #{bert_domain_adaptation_heads.3} parent=0 // pred_check_branch
    %13 = sbr.rel (0) target = $region13
  $region12: #{bert_domain_adaptation_heads.3} parent=0 // pred_region
    _
  $region13: #{bert_domain_adaptation_heads.3} parent=0 // pred_fallthru
    _
  %v14 = vld [vmem:[%s0] sm:$0x3]
  %v15 = vld [vmem:[%s1] sm:$0xff]
  %v16 = vld [vmem:[%s1 + $0x8] sm:$0xff]
  %v17 = vld [vmem:[%s1 + $0x10] sm:$0xff]
  %v18 = vld [vmem:[%s1 + $0x18] sm:$0xff]
  %v19 = vld [vmem:[%s2] sm:$0x1]
  %v21 = vperm.slane %v19, 0
  %vm23 = vcmask 261120
  %v25 = vsel %vm23, %v14, 0
  %27 = vmatpush.msra.mxu0 0.0
  %28 = vmatpush.msra.mxu0 0.0
  %29 = vmatpush.msra.mxu0 0.0
  %30 = vmatpush.msra.mxu0 0.0
  %31 = vmatpush.msra.mxu0 0.0
  %32 = vmatpush.msra.mxu0 0.0
  %33 = vmatpush.msra.mxu0 0.0
  %34 = vmatpush.msra.mxu0 0.0
  %35 = vmatpush.msra.mxu0 0.0
  %36 = vmatpush.msra.mxu0 0.0
  %37 = vmatpush.msra.mxu0 0.0
  %38 = vmatpush.msra.mxu0 0.0
  %39 = vmatpush.msra.mxu0 %v18
  %40 = vmatpush.msra.mxu0 %v17
  %41 = vmatpush.msra.mxu0 %v16
  %42 = vmatpush.msra.mxu0 %v15
  %43 = vmatmul.f32.gmra.mxu0 %v25
  %v44 = vpop.f32.mrf.mxu0
  %v45 = vadd.f32 %v21, %v44
  %46 = vdwg.mxu0
  %vm47 = vcmask 25600
  %48 = vst.msk [vmem:[%s3] sm:$0x3] %vm47, %v45
  // Predicated region
  $region14: #{bert_domain_adaptation_heads.3} parent=0 // pred_check
    _
  $region15: #{bert_domain_adaptation_heads.3} parent=0 // pred_check_branch
    %50 = sbr.rel (0) target = $region17
  $region16: #{bert_domain_adaptation_heads.3} parent=0 // pred_region
    _
  $region17: #{bert_domain_adaptation_heads.3} parent=0 // pred_fallthru
    _
  // Predicated region
  $region18: #{bert_domain_adaptation_heads.3} parent=0 // pred_check
    _
  $region19: #{bert_domain_adaptation_heads.3} parent=0 // pred_check_branch
    %52 = sbr.rel (0) target = $region21
  $region20: #{bert_domain_adaptation_heads.3} parent=0 // pred_region
    _
  $region21: #{bert_domain_adaptation_heads.3} parent=0 // pred_fallthru
    _

// kernel: bert_domain_adaptation_heads.2
$region0: #{bert_domain_adaptation_heads.2}
  #allocation0 [shape = 'u32[]', space=smem, size = 0x4, offset = 0x4, fixed_abs, tag = 'smem constant byte address 0x4 - core index']
  #allocation1 [shape = 'u32[72,128]{1,0:T(1,128)}', space=vmem, size = 0x9000, scoped, tag = 'internal scratch']
  #allocation2 [shape = 'bf16[24,32]{1,0:T(8,128)(2,1)}', space=vmem, size = 0x1800, scoped, tag = 'scratch operand']
  %s0 = inlined_call_operand.vmem [shape: f32[24,32], index: 0, kind: input, shape index: {}]
  %s1 = inlined_call_operand.vmem [shape: f32[32,32], index: 1, kind: input, shape index: {}]
  %s2 = inlined_call_operand.vmem [shape: f32[1,32], index: 2, kind: input, shape index: {}]
  %s3 = inlined_call_operand.vmem [shape: f32[1,32], index: 3, kind: input, shape index: {}]
  %s4 = inlined_call_operand.vmem [shape: f32[1,32], index: 4, kind: input, shape index: {}]
  %s5 = inlined_call_operand.vmem [shape: bf16[32,256], index: 5, kind: input, shape index: {}]
  %s6 = inlined_call_operand.vmem [shape: f32[1,256], index: 6, kind: input, shape index: {}]
  %s7 = inlined_call_operand.vmem [shape: f32[24,256], index: 7, kind: output, shape index: {}]
  %s8 = sld [smem:[#allocation0]]
  $region42: #{bert_domain_adaptation_heads.2} parent=0
    _
  %s10 = ssub.s32 1, %s8
  %s11 = scalar_select 0, %s10, %s8
  // Predicated region
  $region2: #{bert_domain_adaptation_heads.2} parent=0 // pred_check
    _
  $region3: #{bert_domain_adaptation_heads.2} parent=0 // pred_check_branch
    %13 = sbr.rel (0) target = $region5
  $region4: #{bert_domain_adaptation_heads.2} parent=0 // pred_region
    _
  $region5: #{bert_domain_adaptation_heads.2} parent=0 // pred_fallthru
    _
  // Predicated region
  $region6: #{bert_domain_adaptation_heads.2} parent=0 // pred_check
    _
  $region7: #{bert_domain_adaptation_heads.2} parent=0 // pred_check_branch
    %15 = sbr.rel (0) target = $region9
  $region8: #{bert_domain_adaptation_heads.2} parent=0 // pred_region
    _
  $region9: #{bert_domain_adaptation_heads.2} parent=0 // pred_fallthru
    _
  // Predicated region
  $region10: #{bert_domain_adaptation_heads.2} parent=0 // pred_check
    _
  $region11: #{bert_domain_adaptation_heads.2} parent=0 // pred_check_branch
    %17 = sbr.rel (0) target = $region13
  $region12: #{bert_domain_adaptation_heads.2} parent=0 // pred_region
    _
  $region13: #{bert_domain_adaptation_heads.2} parent=0 // pred_fallthru
    _
  // Predicated region
  $region14: #{bert_domain_adaptation_heads.2} parent=0 // pred_check
    _
  $region15: #{bert_domain_adaptation_heads.2} parent=0 // pred_check_branch
    %19 = sbr.rel (0) target = $region17
  $region16: #{bert_domain_adaptation_heads.2} parent=0 // pred_region
    _
  $region17: #{bert_domain_adaptation_heads.2} parent=0 // pred_fallthru
    _
  // Predicated region
  $region18: #{bert_domain_adaptation_heads.2} parent=0 // pred_check
    _
  $region19: #{bert_domain_adaptation_heads.2} parent=0 // pred_check_branch
    %21 = sbr.rel (0) target = $region21
  $region20: #{bert_domain_adaptation_heads.2} parent=0 // pred_region
    _
  $region21: #{bert_domain_adaptation_heads.2} parent=0 // pred_fallthru
    _
  // Predicated region
  $region22: #{bert_domain_adaptation_heads.2} parent=0 // pred_check
    _
  $region23: #{bert_domain_adaptation_heads.2} parent=0 // pred_check_branch
    %23 = sbr.rel (0) target = $region25
  $region24: #{bert_domain_adaptation_heads.2} parent=0 // pred_region
    _
  $region25: #{bert_domain_adaptation_heads.2} parent=0 // pred_fallthru
    _
  // Predicated region
  $region26: #{bert_domain_adaptation_heads.2} parent=0 // pred_check
    _
  $region27: #{bert_domain_adaptation_heads.2} parent=0 // pred_check_branch
    %25 = sbr.rel (0) target = $region29
  $region28: #{bert_domain_adaptation_heads.2} parent=0 // pred_region
    _
  $region29: #{bert_domain_adaptation_heads.2} parent=0 // pred_fallthru
    _
  %p27 = scmp.eq.s32.totalorder 0, 0
  // Predicated region
  $region30: #{bert_domain_adaptation_heads.2} parent=0 // pred_check
    %p28 = pneg %p27
  $region31: #{bert_domain_adaptation_heads.2} parent=0 // pred_check_branch
    %30 = sbr.rel (%p28) target = $region33
  $region32: #{bert_domain_adaptation_heads.2} parent=0 // pred_region
    %v31 = vld [vmem:[%s0] sm:$0xff]
    %v32 = vld [vmem:[%s0 + $0x8] sm:$0xff]
    %v33 = vld [vmem:[%s0 + $0x10] sm:$0xff]
    %v34 = vld [vmem:[%s1] sm:$0xff]
    %v35 = vld [vmem:[%s1 + $0x8] sm:$0xff]
    %v36 = vld [vmem:[%s1 + $0x10] sm:$0xff]
    %v37 = vld [vmem:[%s1 + $0x18] sm:$0xff]
    %v38 = vld [vmem:[%s2] sm:$0x1]
    %v40 = vperm.slane %v38, 0
    %vm42 = vcmask 261120
    %v44 = vsel %vm42, %v31, 0
    %v47 = vsel %vm42, %v32, 0
    %v50 = vsel %vm42, %v33, 0
    %52 = vmatpush.msra.mxu0 0.0
    %53 = vmatpush.msra.mxu0 0.0
    %54 = vmatpush.msra.mxu0 0.0
    %55 = vmatpush.msra.mxu0 0.0
    %56 = vmatpush.msra.mxu0 0.0
    %57 = vmatpush.msra.mxu0 0.0
    %58 = vmatpush.msra.mxu0 0.0
    %59 = vmatpush.msra.mxu0 0.0
    %60 = vmatpush.msra.mxu0 0.0
    %61 = vmatpush.msra.mxu0 0.0
    %62 = vmatpush.msra.mxu0 0.0
    %63 = vmatpush.msra.mxu0 0.0
    %64 = vmatpush.msra.mxu0 %v37
    %65 = vmatpush.msra.mxu0 %v36
    %66 = vmatpush.msra.mxu0 %v35
    %67 = vmatpush.msra.mxu0 %v34
    %68 = vmatmul.f32.gmra.mxu0 %v44
    %v69 = vpop.f32.mrf.mxu0
    %v70 = vadd.f32 %v40, %v69
    %71 = vmatmul.f32.gmra.mxu0 %v47
    %v72 = vpop.f32.mrf.mxu0
    %v73 = vadd.f32 %v40, %v72
    %74 = vmatmul.f32.gmra.mxu0 %v50
    %v75 = vpop.f32.mrf.mxu0
    %v76 = vadd.f32 %v40, %v75
    %77 = vdwg.mxu0
    %v78 = vmul.f32 %v70, 0.5
    %v79 = vmul.f32 %v73, 0.5
    %v80 = vmul.f32 %v76, 0.5
    %v81 = vrcp.pop 1.4142135
    %v82 = vmul.f32 1.4142135, %v81
    %v83 = vsub.f32 1.0, %v82
    %v84 = vmul.f32 %v81, %v83
    %v85 = vadd.f32 %v81, %v84
    %vm86 = vweird.f32 %v81
    %v87 = vsel %vm86, %v81, %v85
    %v88 = vmul.f32 %v70, %v87
    %v89 = vmul.f32 %v73, %v87
    %v90 = vmul.f32 %v76, %v87
    %v91 = vmul.f32 %v88, %v88
    %v92 = vmin.f32 16.0, %v91
    %v93 = vmul.f32 %v92, 2.1237322e-06
    %v94 = vadd.f32 %v93, 0.00028619796
    %v95 = vmul.f32 %v92, %v94
    %v96 = vadd.f32 %v95, 0.0036580483
    %v97 = vmul.f32 %v92, %v96
    %v98 = vadd.f32 %v97, 0.05243302
    %v99 = vmul.f32 %v92, %v98
    %v100 = vadd.f32 %v99, 0.18741608
    %v101 = vmul.f32 %v92, %v100
    %v102 = vadd.f32 %v101, 1.1283791
    %v103 = vmul.f32 %v88, %v102
    %v104 = vmul.f32 %v92, 3.8918573e-05
    %v105 = vadd.f32 %v104, 0.001143296
    %v106 = vmul.f32 %v92, %v105
    %v107 = vadd.f32 %v106, 0.014752088
    %v108 = vmul.f32 %v92, %v107
    %v109 = vadd.f32 %v108, 0.112945676
    %v110 = vmul.f32 %v92, %v109
    %v111 = vadd.f32 %v110, 0.4994258
    %v112 = vmul.f32 %v92, %v111
    %v113 = vadd.f32 %v112, 1.0
    %v114 = vrcp.pop %v113
    %v115 = vmul.f32 %v113, %v114
    %v116 = vsub.f32 1.0, %v115
    %v117 = vmul.f32 %v114, %v116
    %v118 = vadd.f32 %v114, %v117
    %vm119 = vweird.f32 %v113
    %vm120 = vweird.f32 %v114
    %vm121 = vmor %vm119, %vm120
    %v122 = vsel %vm121, %v114, %v118
    %v123 = vand.u32 2147483647, %v113
    %vm124 = vcmp.eq.f32.partialorder %v123, 8.507059e+37
    %v125 = vand.u32 %v113, 2147483648
    %v126 = vor.u32 1.1754944e-38, %v125
    %v127 = vsel %vm124, %v126, %v122
    %v128 = vmul.f32 %v103, %v127
    %v129 = vmin.f32 %v128, 1.0
    %v130 = vmax.f32 %v129, -1.0
    %v131 = vmul.f32 %v89, %v89
    %v132 = vmin.f32 16.0, %v131
    %v133 = vmul.f32 %v132, 2.1237322e-06
    %v134 = vadd.f32 %v133, 0.00028619796
    %v135 = vmul.f32 %v132, %v134
    %v136 = vadd.f32 %v135, 0.0036580483
    %v137 = vmul.f32 %v132, %v136
    %v138 = vadd.f32 %v137, 0.05243302
    %v139 = vmul.f32 %v132, %v138
    %v140 = vadd.f32 %v139, 0.18741608
    %v141 = vmul.f32 %v132, %v140
    %v142 = vadd.f32 %v141, 1.1283791
    %v143 = vmul.f32 %v89, %v142
    %v144 = vmul.f32 %v132, 3.8918573e-05
    %v145 = vadd.f32 %v144, 0.001143296
    %v146 = vmul.f32 %v132, %v145
    %v147 = vadd.f32 %v146, 0.014752088
    %v148 = vmul.f32 %v132, %v147
    %v149 = vadd.f32 %v148, 0.112945676
    %v150 = vmul.f32 %v132, %v149
    %v151 = vadd.f32 %v150, 0.4994258
    %v152 = vmul.f32 %v132, %v151
    %v153 = vadd.f32 %v152, 1.0
    %v154 = vrcp.pop %v153
    %v155 = vmul.f32 %v153, %v154
    %v156 = vsub.f32 1.0, %v155
    %v157 = vmul.f32 %v154, %v156
    %v158 = vadd.f32 %v154, %v157
    %vm159 = vweird.f32 %v153
    %vm160 = vweird.f32 %v154
    %vm161 = vmor %vm159, %vm160
    %v162 = vsel %vm161, %v154, %v158
    %v163 = vand.u32 2147483647, %v153
    %vm164 = vcmp.eq.f32.partialorder %v163, 8.507059e+37
    %v165 = vand.u32 %v153, 2147483648
    %v166 = vor.u32 1.1754944e-38, %v165
    %v167 = vsel %vm164, %v166, %v162
    %v168 = vmul.f32 %v143, %v167
    %v169 = vmin.f32 %v168, 1.0
    %v170 = vmax.f32 %v169, -1.0
    %v171 = vmul.f32 %v90, %v90
    %v172 = vmin.f32 16.0, %v171
    %v173 = vmul.f32 %v172, 2.1237322e-06
    %v174 = vadd.f32 %v173, 0.00028619796
    %v175 = vmul.f32 %v172, %v174
    %v176 = vadd.f32 %v175, 0.0036580483
    %v177 = vmul.f32 %v172, %v176
    %v178 = vadd.f32 %v177, 0.05243302
    %v179 = vmul.f32 %v172, %v178
    %v180 = vadd.f32 %v179, 0.18741608
    %v181 = vmul.f32 %v172, %v180
    %v182 = vadd.f32 %v181, 1.1283791
    %v183 = vmul.f32 %v90, %v182
    %v184 = vmul.f32 %v172, 3.8918573e-05
    %v185 = vadd.f32 %v184, 0.001143296
    %v186 = vmul.f32 %v172, %v185
    %v187 = vadd.f32 %v186, 0.014752088
    %v188 = vmul.f32 %v172, %v187
    %v189 = vadd.f32 %v188, 0.112945676
    %v190 = vmul.f32 %v172, %v189
    %v191 = vadd.f32 %v190, 0.4994258
    %v192 = vmul.f32 %v172, %v191
    %v193 = vadd.f32 %v192, 1.0
    %v194 = vrcp.pop %v193
    %v195 = vmul.f32 %v193, %v194
    %v196 = vsub.f32 1.0, %v195
    %v197 = vmul.f32 %v194, %v196
    %v198 = vadd.f32 %v194, %v197
    %vm199 = vweird.f32 %v193
    %vm200 = vweird.f32 %v194
    %vm201 = vmor %vm199, %vm200
    %v202 = vsel %vm201, %v194, %v198
    %v203 = vand.u32 2147483647, %v193
    %vm204 = vcmp.eq.f32.partialorder %v203, 8.507059e+37
    %v205 = vand.u32 %v193, 2147483648
    %v206 = vor.u32 1.1754944e-38, %v205
    %v207 = vsel %vm204, %v206, %v202
    %v208 = vmul.f32 %v183, %v207
    %v209 = vmin.f32 %v208, 1.0
    %v210 = vmax.f32 %v209, -1.0
    %v211 = vadd.f32 %v130, 1.0
    %v212 = vadd.f32 %v170, 1.0
    %v213 = vadd.f32 %v210, 1.0
    %v214 = vmul.f32 %v78, %v211
    %v215 = vmul.f32 %v79, %v212
    %v216 = vmul.f32 %v80, %v213
    %v217 = vsel %vm42, %v214, 0.0
    %218 = vadd.xlane.f32.xlu0 %v217
    %v219 = vpop.xlane.xlu0 %218
    %v220 = vsel %vm42, %v215, 0.0
    %221 = vadd.xlane.f32.xlu0 %v220
    %v222 = vpop.xlane.xlu0 %221
    %v223 = vsel %vm42, %v216, 0.0
    %224 = vadd.xlane.f32.xlu0 %v223
    %v225 = vpop.xlane.xlu0 %224
    %v226 = vrcp.pop 32.0
    %v227 = vmul.f32 32.0, %v226
    %v228 = vsub.f32 1.0, %v227
    %v229 = vmul.f32 %v226, %v228
    %v230 = vadd.f32 %v226, %v229
    %vm231 = vweird.f32 %v226
    %v232 = vsel %vm231, %v226, %v230
    %v233 = vmul.f32 %v219, %v232
    %v234 = vmul.f32 %v222, %v232
    %v235 = vmul.f32 %v225, %v232
    %v236 = vsub.f32 %v214, %v233
    %v237 = vsub.f32 %v215, %v234
    %v238 = vsub.f32 %v216, %v235
    %v239 = vmul.f32 %v236, %v236
    %v240 = vmul.f32 %v237, %v237
    %v241 = vmul.f32 %v238, %v238
    %v242 = vsel %vm42, %v239, 0.0
    %243 = vadd.xlane.f32.xlu0 %v242
    %v244 = vpop.xlane.xlu0 %243
    %v245 = vsel %vm42, %v240, 0.0
    %246 = vadd.xlane.f32.xlu0 %v245
    %v247 = vpop.xlane.xlu0 %246
    %v248 = vsel %vm42, %v241, 0.0
    %249 = vadd.xlane.f32.xlu0 %v248
    %v250 = vpop.xlane.xlu0 %249
    %v251 = vmul.f32 %v244, %v232
    %v252 = vmul.f32 %v247, %v232
    %v253 = vmul.f32 %v250, %v232
    %v254 = vadd.f32 %v251, 1e-12
    %v255 = vadd.f32 %v252, 1e-12
    %v256 = vadd.f32 %v253, 1e-12
    %v257 = vrsqrt.pop %v254
    %v258 = vmul.f32 %v257, %v254
    %v259 = vmul.f32 %v258, %v257
    %v260 = vmul.f32 0.5, %v259
    %v261 = vsub.f32 1.5, %v260
    %v262 = vmul.f32 %v257, %v261
    %vm263 = vweird.f32 %v254
    %vm264 = vweird.f32 %v257
    %vm265 = vmor %vm263, %vm264
    %v266 = vsel %vm265, %v257, %v262
    %v267 = vrsqrt.pop %v255
    %v268 = vmul.f32 %v267, %v255
    %v269 = vmul.f32 %v268, %v267
    %v270 = vmul.f32 0.5, %v269
    %v271 = vsub.f32 1.5, %v270
    %v272 = vmul.f32 %v267, %v271
    %vm273 = vweird.f32 %v255
    %vm274 = vweird.f32 %v267
    %vm275 = vmor %vm273, %vm274
    %v276 = vsel %vm275, %v267, %v272
    %v277 = vrsqrt.pop %v256
    %v278 = vmul.f32 %v277, %v256
    %v279 = vmul.f32 %v278, %v277
    %v280 = vmul.f32 0.5, %v279
    %v281 = vsub.f32 1.5, %v280
    %v282 = vmul.f32 %v277, %v281
    %vm283 = vweird.f32 %v256
    %vm284 = vweird.f32 %v277
    %vm285 = vmor %vm283, %vm284
    %v286 = vsel %vm285, %v277, %v282
    %v287 = vmul.f32 %v236, %v266
    %v288 = vmul.f32 %v237, %v276
    %v289 = vmul.f32 %v238, %v286
    %v290 = vld [vmem:[%s3] sm:$0x1]
    %v292 = vperm.slane %v290, 0
    %v294 = vmul.f32 %v287, %v292
    %v295 = vmul.f32 %v288, %v292
    %v296 = vmul.f32 %v289, %v292
    %v297 = vld [vmem:[%s4] sm:$0x1]
    %v299 = vperm.slane %v297, 0
    %v301 = vadd.f32 %v294, %v299
    %v302 = vadd.f32 %v295, %v299
    %v303 = vadd.f32 %v296, %v299
    %v304 = vpack.c.bf16 %v301, %v301
    %v305 = vpack.c.bf16 %v302, %v302
    %v306 = vpack.c.bf16 %v303, %v303
    %vm307 = vcmask 257024
    %308 = vst.msk [vmem:[#allocation2] sm:$0xf] %vm307, %v304
    %309 = vst.msk [vmem:[#allocation2 + $0x4] sm:$0xf] %vm307, %v305
    %310 = vst.msk [vmem:[#allocation2 + $0x8] sm:$0xf] %vm307, %v306
  $region33: #{bert_domain_adaptation_heads.2} parent=0 // pred_fallthru
    _
  %v311 = vld [vmem:[#allocation2] sm:$0xf]
  %v312 = vld [vmem:[#allocation2 + $0x4] sm:$0xf]
  %v313 = vld [vmem:[#allocation2 + $0x8] sm:$0xf]
  %v314 = vld [vmem:[%s5] sm:$0xff]
  %v315 = vld [vmem:[%s5 + $0x8] sm:$0xff]
  %v316 = vld [vmem:[%s5 + $0x10] sm:$0xff]
  %v317 = vld [vmem:[%s5 + $0x18] sm:$0xff]
  %v318 = vld [vmem:[%s6] sm:$0x3]
  %v320 = vperm.slane %v318, 0
  %v321 = vperm.slane %v318, 1
  %v327 = vunpack.c.l.b16 %v311
  %v328 = vunpack.c.l.b16 %v312
  %v329 = vunpack.c.l.b16 %v313
  %v330 = vpack.c.b16 %v328, %v327
  %v331 = vpack.c.b16 %v329, %v329
  %v336 = vunpack.c.l.b16 %v314
  %v337 = vunpack.c.h.b16 %v314
  %v338 = vunpack.c.l.b16 %v315
  %v339 = vunpack.c.h.b16 %v315
  %v340 = vunpack.c.l.b16 %v316
  %v341 = vunpack.c.h.b16 %v316
  %v342 = vunpack.c.l.b16 %v317
  %v343 = vunpack.c.h.b16 %v317
  %v344 = vpack.c.b16 %v338, %v336
  %v345 = vpack.c.b16 %v339, %v337
  %v346 = vpack.c.b16 %v342, %v340
  %v347 = vpack.c.b16 %v343, %v341
  %vm352 = vcmask 261120
  %v354 = vsel %vm352, %v330, 0
  %v357 = vsel %vm352, %v331, 0
  %359 = vmatpush.bf16.msra.mxu0 0
  %360 = vmatpush.bf16.msra.mxu0 0
  %361 = vmatpush.bf16.msra.mxu0 0
  %362 = vmatpush.bf16.msra.mxu0 0
  %363 = vmatpush.bf16.msra.mxu0 0
  %364 = vmatpush.bf16.msra.mxu0 0
  %365 = vmatpush.bf16.msra.mxu0 %v346
  %366 = vmatpush.bf16.msra.mxu0 %v344
  %367 = vmatmul.bf16.gmra.mxu0 %v354
  %v368 = vpop.f32.mrf.mxu0
  %v369 = vadd.f32 %v320, %v368
  %v370 = vpop.f32.mrf.mxu0
  %v371 = vadd.f32 %v320, %v370
  %372 = vmatmul.bf16.gmra.mxu0 %v357
  %v373 = vpop.f32.mrf.mxu0
  %v374 = vadd.f32 %v320, %v373
  %v375 = vpop.f32.mrf.mxu0
  %376 = vdwg.mxu0
  %377 = vmatpush.bf16.msra.mxu0 0
  %378 = vmatpush.bf16.msra.mxu0 0
  %379 = vmatpush.bf16.msra.mxu0 0
  %380 = vmatpush.bf16.msra.mxu0 0
  %381 = vmatpush.bf16.msra.mxu0 0
  %382 = vmatpush.bf16.msra.mxu0 0
  %383 = vmatpush.bf16.msra.mxu0 %v347
  %384 = vmatpush.bf16.msra.mxu0 %v345
  %385 = vmatmul.bf16.gmra.mxu0 %v354
  %v386 = vpop.f32.mrf.mxu0
  %v387 = vadd.f32 %v321, %v386
  %v388 = vpop.f32.mrf.mxu0
  %v389 = vadd.f32 %v321, %v388
  %390 = vmatmul.bf16.gmra.mxu0 %v357
  %v391 = vpop.f32.mrf.mxu0
  %v392 = vadd.f32 %v321, %v391
  %v393 = vpop.f32.mrf.mxu0
  %394 = vdwg.mxu0
  %395 = vst [vmem:[%s7] sm:$0xff] %v369
  %396 = vst [vmem:[%s7 + $0x8] sm:$0xff] %v387
  %397 = vst [vmem:[%s7 + $0x10] sm:$0xff] %v371
  %398 = vst [vmem:[%s7 + $0x18] sm:$0xff] %v389
  %399 = vst [vmem:[%s7 + $0x20] sm:$0xff] %v374
  %400 = vst [vmem:[%s7 + $0x28] sm:$0xff] %v392
  // Predicated region
  $region34: #{bert_domain_adaptation_heads.2} parent=0 // pred_check
    _
  $region35: #{bert_domain_adaptation_heads.2} parent=0 // pred_check_branch
    %402 = sbr.rel (0) target = $region37
  $region36: #{bert_domain_adaptation_heads.2} parent=0 // pred_region
    _
  $region37: #{bert_domain_adaptation_heads.2} parent=0 // pred_fallthru
    _
  // Predicated region
  $region38: #{bert_domain_adaptation_heads.2} parent=0 // pred_check
    _
  $region39: #{bert_domain_adaptation_heads.2} parent=0 // pred_check_branch
    %404 = sbr.rel (0) target = $region41
  $region40: #{bert_domain_adaptation_heads.2} parent=0 // pred_region
    _
  $region41: #{bert_domain_adaptation_heads.2} parent=0 // pred_fallthru
    _

</llo_original>
